<compile_context>
chip_gen: v6e
topology: v6e:2x2x1
jax: 0.10.0
libtpu: 0.0.40
codegen_flags: <defaults>
</compile_context>

<pallas_src>
import functools

import jax
import jax.numpy as jnp
import numpy as np
from jax.experimental import pallas as pl
from jax.experimental.pallas import tpu as pltpu

_BIG = 99999999.0
_PAD_ID = jnp.iinfo(jnp.int32).min  # padded gallery id: matches no real person id


def _round_up(x, m):
    return (x + m - 1) // m * m


def _vmem_capacity_bytes():
    # Physical VMEM per TensorCore (v5e/v6e: 128 MiB, v7x: 64 MiB); conservative fallback.
    try:
        return int(pltpu.get_tpu_info().vmem_capacity_bytes)
    except Exception:
        return 64 << 20


def _cloth_triplet_kernel(margin, q_ref, gt_ref, lab_c_ref, lab_r_ref, out_ref):
    # Cosine similarity tile. Rows are pre-L2-normalized in the wrapper and the gallery is
    # pre-transposed, so this is a canonical (TM, D) x (D, B_pad) MXU matmul, f32 accumulate.
    sim = jnp.dot(q_ref[...], gt_ref[...], preferred_element_type=jnp.float32)  # (TM, B_pad)

    lab_c = lab_c_ref[...]                       # (TM, 2)  col 0 = person id, col 1 = cloth id
    lab_r = lab_r_ref[...]                       # (2, B_pad) row 0 = person id, row 1 = cloth id
    id_c, cl_c = lab_c[:, 0:1], lab_c[:, 1:2]    # (TM, 1)
    id_r, cl_r = lab_r[0:1, :], lab_r[1:2, :]    # (1, B_pad)

    # ---- label masks (boolean, broadcast only; padded gallery columns never match) ----
    id_eq = id_c == id_r                         # same person id     (TM, B_pad)
    cl_eq = cl_c == cl_r                         # same cloth id      (TM, B_pad)
    xor = jnp.logical_xor(id_eq, cl_eq)
    gal_has_cloth = cl_r != -1                   # (1, B_pad), grid-invariant & tiny
    mask_neg1 = jnp.logical_and(xor, gal_has_cloth)
    mask_neg2 = jnp.logical_xor(xor, mask_neg1)  # == xor & ~gal_has_cloth (mask_neg1 subset of xor)

    # ---- hard mining directly on sim (dist = 1 - sim; the constants cancel below) ----
    s_pos_min = jnp.min(jnp.where(cl_eq, sim, _BIG), axis=1, keepdims=True)       # (TM, 1)
    s_neg1_max = jnp.max(jnp.where(mask_neg1, sim, -_BIG), axis=1, keepdims=True)
    s_neg2_max = jnp.max(jnp.where(mask_neg2, sim, -_BIG), axis=1, keepdims=True)

    # relu(dist_ap - dist_an + m) == relu(s_neg_max - s_pos_min + m)
    l1 = jnp.maximum(s_neg1_max - s_pos_min + margin, 0.0)
    l2 = jnp.maximum(s_neg2_max - s_pos_min + margin, 0.0)

    # Only query rows with cloth != -1 participate; padded rows are padded with cloth == -1
    # so they are explicitly zeroed here (not just implicitly via zero features).
    row_valid = cl_c != -1
    out_ref[...] = jnp.where(row_valid, l1 + l2, 0.0)


def cloth_triplet_loss(inputs, id_targets, cloth_targets, margin=0.3,
                       block_rows=256, matmul_dtype=None):
    """inputs: (B, D) float; id_targets, cloth_targets: (B,) int. Returns scalar f32 loss.

    matmul_dtype: dtype used for the Gram matmul operands. Default keeps the input precision
    (bf16 stays bf16, everything else f32). Pass jnp.bfloat16 on v5e for ~4x MXU throughput
    (validate: hard mining can flip on near-ties).
    """
    B, D = inputs.shape

    # F.normalize(p=2, dim=1): eps 1e-12 on the norm == 1e-24 on the squared norm.
    x32 = inputs.astype(jnp.float32)
    xn = x32 * jax.lax.rsqrt(
        jnp.maximum(jnp.sum(jnp.square(x32), axis=1, keepdims=True), 1e-24))

    if matmul_dtype is None:
        matmul_dtype = jnp.bfloat16 if inputs.dtype == jnp.bfloat16 else jnp.float32
    xn = xn.astype(matmul_dtype)

    TM = min(block_rows, _round_up(B, 8))
    B_pad = _round_up(B, TM)
    pad = B_pad - B

    ids = id_targets.astype(jnp.int32)
    cls = cloth_targets.astype(jnp.int32)
    if pad:
        xn = jnp.pad(xn, ((0, pad), (0, 0)))
        ids = jnp.pad(ids, (0, pad), constant_values=_PAD_ID)   # matches no real person id
        cls = jnp.pad(cls, (0, pad), constant_values=-1)        # explicitly invalid query rows

    # Pre-transposed gallery (one mem-bound XLA pass) -> canonical MXU contraction in-kernel.
    xnT = xn.T                                                  # (D, B_pad)
    lab_c = jnp.stack([ids, cls], axis=1)                       # (B_pad, 2) query-side columns
    lab_r = jnp.stack([ids, cls], axis=0)                       # (2, B_pad) gallery-side rows

    num_tiles = B_pad // TM
    itemsize = jnp.dtype(matmul_dtype).itemsize
    est = (B_pad * D * itemsize          # resident gallery^T (single-buffered)
           + 2 * TM * D * itemsize       # double-buffered LHS query tile
           + 8 * TM * B_pad * 4          # sim tile + mask / select temporaries
           + 16 * B_pad * 4)             # label vectors (both orientations) + output
    vmem_cap = _vmem_capacity_bytes()
    vmem_limit = int(min(max(2 * est, 32 << 20), (3 * vmem_cap) // 4))  # 48 MiB v7x, 96 MiB v5e/v6e

    kernel = functools.partial(_cloth_triplet_kernel, float(margin))

    def _call(single_buffer_invariants):
        # Loop-invariant inputs (constant index_map) don't need a second pipeline buffer.
        inv = {"pipeline_mode": pl.Buffered(1)} if single_buffer_invariants else {}
        return pl.pallas_call(
            kernel,
            out_shape=jax.ShapeDtypeStruct((B_pad, 1), jnp.float32),
            grid_spec=pltpu.PrefetchScalarGridSpec(
                num_scalar_prefetch=0,
                grid=(num_tiles,),
                in_specs=[
                    pl.BlockSpec((TM, D), lambda i: (i, 0)),             # normalized query rows
                    pl.BlockSpec((D, B_pad), lambda i: (0, 0), **inv),   # normalized gallery^T
                    pl.BlockSpec((TM, 2), lambda i: (i, 0)),             # [id, cloth] query cols
                    pl.BlockSpec((2, B_pad), lambda i: (0, 0), **inv),   # [id, cloth] gallery rows
                ],
                out_specs=pl.BlockSpec((TM, 1), lambda i: (i, 0)),       # per-row losses (tiny)
            ),
            compiler_params=pltpu.CompilerParams(
                dimension_semantics=("parallel",),
                vmem_limit_bytes=vmem_limit,
            ),
        )(xn, xnT, lab_c, lab_r)

    try:
        per_row = _call(True)
    except Exception:
        # Fallback for toolchains where single-buffering via pl.Buffered(1) is not accepted.
        per_row = _call(False)

    valid = cloth_targets.astype(jnp.int32) != -1
    count = jnp.sum(valid.astype(jnp.float32))
    total = jnp.sum(per_row)   # padded rows are explicitly zero (cloth padded with -1)
    # NOTE: if every cloth_target == -1 the PyTorch mean would be NaN; we guard instead.
    return total / jnp.maximum(count, 1.0)


def _reference_numpy(inputs, id_t, cl_t, margin=0.3):
    """Direct transcription of the PyTorch forward (single device => gather == identity)."""
    x = np.asarray(inputs, np.float32)
    x = x / np.maximum(np.linalg.norm(x, axis=1, keepdims=True), 1e-12)
    id_t = np.asarray(id_t)
    cl_t = np.asarray(cl_t)
    keep = cl_t != -1
    xo = x[keep]
    dist = 1.0 - xo @ x.T
    ido, idg = id_t[keep][:, None], id_t[None, :]
    clo, clg = cl_t[keep][:, None], cl_t[None, :]
    mp1 = ido == idg
    mp2 = clo == clg
    mask_pos = mp2.astype(np.float32)
    xor = mp1 ^ mp2
    mn1 = (xor & (clg != -1)).astype(np.float32)
    mn2 = (xor & (clg == -1)).astype(np.float32)
    dap = np.max(dist - (1.0 - mask_pos) * _BIG, axis=1)
    dan1 = np.min(dist + (1.0 - mn1) * _BIG, axis=1)
    dan2 = np.min(dist + (1.0 - mn2) * _BIG, axis=1)
    l1 = np.mean(np.maximum(dap - dan1 + margin, 0.0))
    l2 = np.mean(np.maximum(dap - dan2 + margin, 0.0))
    return np.float32(l1 + l2)


if __name__ == "__main__":
    key = jax.random.PRNGKey(0)
    k0, k1, k2, k3 = jax.random.split(key, 4)

    # --- small case (single tile, no padding) ---
    B, D = 8, 128
    inputs = jax.random.normal(k0, (B, D), dtype=jnp.float32)
    id_targets = jnp.array([0, 0, 1, 1, 2, 2, 3, 3], dtype=jnp.int32)
    cloth_targets = jnp.array([0, 1, 2, 2, -1, 3, 4, -1], dtype=jnp.int32)

    loss = jax.block_until_ready(cloth_triplet_loss(inputs, id_targets, cloth_targets, 0.3))
    ref = _reference_numpy(np.asarray(inputs), np.asarray(id_targets),
                           np.asarray(cloth_targets), margin=0.3)
    assert np.isfinite(float(loss)), "kernel produced non-finite loss"
    np.testing.assert_allclose(float(loss), float(ref), rtol=1e-3, atol=1e-2)

    # --- larger case: multi-step parallel grid + padding + single-buffered invariants ---
    B2, D2 = 150, 256
    inputs2 = jax.random.normal(k1, (B2, D2), dtype=jnp.float32)
    id2 = jax.random.randint(k2, (B2,), 0, 24, dtype=jnp.int32)
    cl2 = jax.random.randint(k3, (B2,), 0, 40, dtype=jnp.int32)
    cl2 = jnp.where(jnp.arange(B2) % 7 == 0, jnp.int32(-1), cl2)   # some cloth == -1 rows

    loss2 = jax.block_until_ready(cloth_triplet_loss(inputs2, id2, cl2, 0.3, block_rows=128))
    ref2 = _reference_numpy(np.asarray(inputs2), np.asarray(id2), np.asarray(cl2), margin=0.3)
    assert np.isfinite(float(loss2)), "kernel produced non-finite loss (tiled case)"
    np.testing.assert_allclose(float(loss2), float(ref2), rtol=1e-3, atol=1e-2)

    # --- same inputs through the default block_rows (single non-128-multiple tile) ---
    loss3 = jax.block_until_ready(cloth_triplet_loss(inputs2, id2, cl2, 0.3))
    np.testing.assert_allclose(float(loss3), float(ref2), rtol=1e-3, atol=1e-2)

    print("KERNEL_OK")
</pallas_src>

<mosaic_0001>
module attributes {stable_mosaic.version = 11 : i64} {
  func.func @_cloth_triplet_kernel(%arg0: i32, %arg1: memref<8x128xf32, #tpu.memory_space<vmem>>, %arg2: memref<128x8xf32, #tpu.memory_space<vmem>>, %arg3: memref<8x2xi32, #tpu.memory_space<vmem>>, %arg4: memref<2x8xi32, #tpu.memory_space<vmem>>, %arg5: memref<8x1xf32, #tpu.memory_space<vmem>>) attributes {dimension_semantics = [#tpu.dimension_semantics<parallel>], iteration_bounds = array<i64: 1>, scalar_prefetch = 0 : i64, scratch_operands = 0 : i64, tpu.core_type = #tpu.core_type<tc>, window_params = [{transform_indices = @transform_0, window_bounds = array<i64: 8, 128>}, {pipeline_mode = #tpu.pipeline_mode<synchronous>, transform_indices = @transform_1, window_bounds = array<i64: 128, 8>}, {transform_indices = @transform_2, window_bounds = array<i64: 8, 2>}, {pipeline_mode = #tpu.pipeline_mode<synchronous>, transform_indices = @transform_3, window_bounds = array<i64: 2, 8>}, {transform_indices = @transform_4, window_bounds = array<i64: 8, 1>}]} {
    %c0 = arith.constant 0 : index
    %c0_0 = arith.constant 0 : index
    %0 = vector.load %arg1[%c0, %c0_0] : memref<8x128xf32, #tpu.memory_space<vmem>>, vector<8x128xf32>
    %c0_1 = arith.constant 0 : index
    %c0_2 = arith.constant 0 : index
    %1 = vector.load %arg2[%c0_1, %c0_2] : memref<128x8xf32, #tpu.memory_space<vmem>>, vector<128x8xf32>
    %cst = arith.constant dense<0.000000e+00> : vector<8x8xf32>
    %2 = tpu.matmul %0, %1, %cst {dimension_numbers = #tpu.dot_dimension_numbers<[1], [0], [0], [1], [0, 0, 1, 1], [], []>} : vector<8x128xf32>, vector<128x8xf32>, vector<8x8xf32> -> vector<8x8xf32>
    %c0_3 = arith.constant 0 : index
    %c0_4 = arith.constant 0 : index
    %3 = vector.load %arg3[%c0_3, %c0_4] : memref<8x2xi32, #tpu.memory_space<vmem>>, vector<8x2xi32>
    %c0_5 = arith.constant 0 : index
    %c0_6 = arith.constant 0 : index
    %4 = vector.load %arg4[%c0_5, %c0_6] : memref<2x8xi32, #tpu.memory_space<vmem>>, vector<2x8xi32>
    %5 = vector.extract_strided_slice %3 {offsets = [0, 0], sizes = [8, 1], strides = [1, 1]} : vector<8x2xi32> to vector<8x1xi32>
    %6 = vector.extract_strided_slice %3 {offsets = [0, 1], sizes = [8, 1], strides = [1, 1]} : vector<8x2xi32> to vector<8x1xi32>
    %7 = vector.extract_strided_slice %4 {offsets = [0, 0], sizes = [1, 8], strides = [1, 1]} : vector<2x8xi32> to vector<1x8xi32>
    %8 = vector.extract_strided_slice %4 {offsets = [1, 0], sizes = [1, 8], strides = [1, 1]} : vector<2x8xi32> to vector<1x8xi32>
    %9 = vector.broadcast %5 : vector<8x1xi32> to vector<8x8xi32>
    %10 = vector.broadcast %7 : vector<1x8xi32> to vector<8x8xi32>
    %11 = arith.cmpi eq, %9, %10 : vector<8x8xi32>
    %12 = vector.broadcast %6 : vector<8x1xi32> to vector<8x8xi32>
    %13 = vector.broadcast %8 : vector<1x8xi32> to vector<8x8xi32>
    %14 = arith.cmpi eq, %12, %13 : vector<8x8xi32>
    %15 = arith.xori %11, %14 : vector<8x8xi1>
    %c-1_i32 = arith.constant -1 : i32
    %16 = vector.broadcast %c-1_i32 : i32 to vector<1x8xi32>
    %17 = arith.cmpi ne, %8, %16 : vector<1x8xi32>
    %18 = vector.broadcast %17 : vector<1x8xi1> to vector<8x8xi1>
    %19 = arith.andi %15, %18 : vector<8x8xi1>
    %20 = arith.xori %15, %19 : vector<8x8xi1>
    %cst_7 = arith.constant 1.000000e+08 : f32
    %21 = vector.broadcast %cst_7 : f32 to vector<8x8xf32>
    %22 = arith.select %14, %2, %21 : vector<8x8xi1>, vector<8x8xf32>
    %cst_8 = arith.constant dense<0x7F800000> : vector<8xf32>
    %23 = vector.multi_reduction <minimumf>, %22, %cst_8 [1] : vector<8x8xf32> to vector<8xf32>
    %24 = vector.shape_cast %23 : vector<8xf32> to vector<8x1xf32>
    %cst_9 = arith.constant -1.000000e+08 : f32
    %25 = vector.broadcast %cst_9 : f32 to vector<8x8xf32>
    %26 = arith.select %19, %2, %25 : vector<8x8xi1>, vector<8x8xf32>
    %cst_10 = arith.constant dense<0xFF800000> : vector<8xf32>
    %27 = vector.multi_reduction <maximumf>, %26, %cst_10 [1] : vector<8x8xf32> to vector<8xf32>
    %28 = vector.shape_cast %27 : vector<8xf32> to vector<8x1xf32>
    %cst_11 = arith.constant -1.000000e+08 : f32
    %29 = vector.broadcast %cst_11 : f32 to vector<8x8xf32>
    %30 = arith.select %20, %2, %29 : vector<8x8xi1>, vector<8x8xf32>
    %cst_12 = arith.constant dense<0xFF800000> : vector<8xf32>
    %31 = vector.multi_reduction <maximumf>, %30, %cst_12 [1] : vector<8x8xf32> to vector<8xf32>
    %32 = vector.shape_cast %31 : vector<8xf32> to vector<8x1xf32>
    %33 = arith.subf %28, %24 : vector<8x1xf32>
    %cst_13 = arith.constant 3.000000e-01 : f32
    %34 = vector.broadcast %cst_13 : f32 to vector<8x1xf32>
    %35 = arith.addf %33, %34 : vector<8x1xf32>
    %cst_14 = arith.constant 0.000000e+00 : f32
    %36 = vector.broadcast %cst_14 : f32 to vector<8x1xf32>
    %37 = arith.maximumf %35, %36 : vector<8x1xf32>
    %38 = arith.subf %32, %24 : vector<8x1xf32>
    %cst_15 = arith.constant 3.000000e-01 : f32
    %39 = vector.broadcast %cst_15 : f32 to vector<8x1xf32>
    %40 = arith.addf %38, %39 : vector<8x1xf32>
    %cst_16 = arith.constant 0.000000e+00 : f32
    %41 = vector.broadcast %cst_16 : f32 to vector<8x1xf32>
    %42 = arith.maximumf %40, %41 : vector<8x1xf32>
    %c-1_i32_17 = arith.constant -1 : i32
    %43 = vector.broadcast %c-1_i32_17 : i32 to vector<8x1xi32>
    %44 = arith.cmpi ne, %6, %43 : vector<8x1xi32>
    %45 = arith.addf %37, %42 : vector<8x1xf32>
    %cst_18 = arith.constant 0.000000e+00 : f32
    %46 = vector.broadcast %cst_18 : f32 to vector<8x1xf32>
    %47 = arith.select %44, %45, %46 : vector<8x1xi1>, vector<8x1xf32>
    %c0_19 = arith.constant 0 : index
    %c0_20 = arith.constant 0 : index
    %48 = vector.load %arg5[%c0_19, %c0_20] : memref<8x1xf32, #tpu.memory_space<vmem>>, vector<8x1xf32>
    tpu.vector_store %arg5[%c0_19, %c0_20], %47 {strides = array<i32>} : memref<8x1xf32, #tpu.memory_space<vmem>>, vector<8x1xf32>,
    return
  }
  func.func @transform_0(%arg0: i32) -> (i32, i32) {
    %c0_i32 = arith.constant 0 : i32
    %c0_i32_0 = arith.constant 0 : i32
    return %arg0, %c0_i32 : i32, i32
  }
  func.func @transform_1(%arg0: i32) -> (i32, i32) {
    %c0_i32 = arith.constant 0 : i32
    %c0_i32_0 = arith.constant 0 : i32
    %c0_i32_1 = arith.constant 0 : i32
    return %c0_i32, %c0_i32_0 : i32, i32
  }
  func.func @transform_2(%arg0: i32) -> (i32, i32) {
    %c0_i32 = arith.constant 0 : i32
    %c0_i32_0 = arith.constant 0 : i32
    return %arg0, %c0_i32 : i32, i32
  }
  func.func @transform_3(%arg0: i32) -> (i32, i32) {
    %c0_i32 = arith.constant 0 : i32
    %c0_i32_0 = arith.constant 0 : i32
    %c0_i32_1 = arith.constant 0 : i32
    return %c0_i32, %c0_i32_0 : i32, i32
  }
  func.func @transform_4(%arg0: i32) -> (i32, i32) {
    %c0_i32 = arith.constant 0 : i32
    %c0_i32_0 = arith.constant 0 : i32
    return %arg0, %c0_i32 : i32, i32
  }
}

module attributes {stable_mosaic.version = 11 : i64} {
  func.func @_cloth_triplet_kernel(%arg0: i32, %arg1: memref<8x128xf32, #tpu.memory_space<vmem>>, %arg2: memref<128x8xf32, #tpu.memory_space<vmem>>, %arg3: memref<8x2xi32, #tpu.memory_space<vmem>>, %arg4: memref<2x8xi32, #tpu.memory_space<vmem>>, %arg5: memref<8x1xf32, #tpu.memory_space<vmem>>) attributes {dimension_semantics = [#tpu.dimension_semantics<parallel>], iteration_bounds = array<i64: 1>, scalar_prefetch = 0 : i64, scratch_operands = 0 : i64, tpu.core_type = #tpu.core_type<tc>, window_params = [{transform_indices = @transform_0, window_bounds = array<i64: 8, 128>}, {pipeline_mode = #tpu.pipeline_mode<synchronous>, transform_indices = @transform_1, window_bounds = array<i64: 128, 8>}, {transform_indices = @transform_2, window_bounds = array<i64: 8, 2>}, {pipeline_mode = #tpu.pipeline_mode<synchronous>, transform_indices = @transform_3, window_bounds = array<i64: 2, 8>}, {transform_indices = @transform_4, window_bounds = array<i64: 8, 1>}]} {
    %c0 = arith.constant 0 : index
    %c0_0 = arith.constant 0 : index
    %0 = vector.load %arg1[%c0, %c0_0] : memref<8x128xf32, #tpu.memory_space<vmem>>, vector<8x128xf32>
    %c0_1 = arith.constant 0 : index
    %c0_2 = arith.constant 0 : index
    %1 = vector.load %arg2[%c0_1, %c0_2] : memref<128x8xf32, #tpu.memory_space<vmem>>, vector<128x8xf32>
    %cst = arith.constant dense<0.000000e+00> : vector<8x8xf32>
    %2 = tpu.matmul %0, %1, %cst {dimension_numbers = #tpu.dot_dimension_numbers<[1], [0], [0], [1], [0, 0, 1, 1], [], []>} : vector<8x128xf32>, vector<128x8xf32>, vector<8x8xf32> -> vector<8x8xf32>
    %c0_3 = arith.constant 0 : index
    %c0_4 = arith.constant 0 : index
    %3 = vector.load %arg3[%c0_3, %c0_4] : memref<8x2xi32, #tpu.memory_space<vmem>>, vector<8x2xi32>
    %c0_5 = arith.constant 0 : index
    %c0_6 = arith.constant 0 : index
    %4 = vector.load %arg4[%c0_5, %c0_6] : memref<2x8xi32, #tpu.memory_space<vmem>>, vector<2x8xi32>
    %5 = vector.extract_strided_slice %3 {offsets = [0, 0], sizes = [8, 1], strides = [1, 1]} : vector<8x2xi32> to vector<8x1xi32>
    %6 = vector.extract_strided_slice %3 {offsets = [0, 1], sizes = [8, 1], strides = [1, 1]} : vector<8x2xi32> to vector<8x1xi32>
    %7 = vector.extract_strided_slice %4 {offsets = [0, 0], sizes = [1, 8], strides = [1, 1]} : vector<2x8xi32> to vector<1x8xi32>
    %8 = vector.extract_strided_slice %4 {offsets = [1, 0], sizes = [1, 8], strides = [1, 1]} : vector<2x8xi32> to vector<1x8xi32>
    %9 = vector.broadcast %5 : vector<8x1xi32> to vector<8x8xi32>
    %10 = vector.broadcast %7 : vector<1x8xi32> to vector<8x8xi32>
    %11 = arith.cmpi eq, %9, %10 : vector<8x8xi32>
    %12 = vector.broadcast %6 : vector<8x1xi32> to vector<8x8xi32>
    %13 = vector.broadcast %8 : vector<1x8xi32> to vector<8x8xi32>
    %14 = arith.cmpi eq, %12, %13 : vector<8x8xi32>
    %15 = arith.xori %11, %14 : vector<8x8xi1>
    %c-1_i32 = arith.constant -1 : i32
    %16 = vector.broadcast %c-1_i32 : i32 to vector<1x8xi32>
    %17 = arith.cmpi ne, %8, %16 : vector<1x8xi32>
    %18 = vector.broadcast %17 : vector<1x8xi1> to vector<8x8xi1>
    %19 = arith.andi %15, %18 : vector<8x8xi1>
    %20 = arith.xori %15, %19 : vector<8x8xi1>
    %cst_7 = arith.constant 1.000000e+08 : f32
    %21 = vector.broadcast %cst_7 : f32 to vector<8x8xf32>
    %22 = arith.select %14, %2, %21 : vector<8x8xi1>, vector<8x8xf32>
    %cst_8 = arith.constant dense<0x7F800000> : vector<8xf32>
    %23 = vector.multi_reduction <minimumf>, %22, %cst_8 [1] : vector<8x8xf32> to vector<8xf32>
    %24 = vector.shape_cast %23 : vector<8xf32> to vector<8x1xf32>
    %cst_9 = arith.constant -1.000000e+08 : f32
    %25 = vector.broadcast %cst_9 : f32 to vector<8x8xf32>
    %26 = arith.select %19, %2, %25 : vector<8x8xi1>, vector<8x8xf32>
    %cst_10 = arith.constant dense<0xFF800000> : vector<8xf32>
    %27 = vector.multi_reduction <maximumf>, %26, %cst_10 [1] : vector<8x8xf32> to vector<8xf32>
    %28 = vector.shape_cast %27 : vector<8xf32> to vector<8x1xf32>
    %cst_11 = arith.constant -1.000000e+08 : f32
    %29 = vector.broadcast %cst_11 : f32 to vector<8x8xf32>
    %30 = arith.select %20, %2, %29 : vector<8x8xi1>, vector<8x8xf32>
    %cst_12 = arith.constant dense<0xFF800000> : vector<8xf32>
    %31 = vector.multi_reduction <maximumf>, %30, %cst_12 [1] : vector<8x8xf32> to vector<8xf32>
    %32 = vector.shape_cast %31 : vector<8xf32> to vector<8x1xf32>
    %33 = arith.subf %28, %24 : vector<8x1xf32>
    %cst_13 = arith.constant 3.000000e-01 : f32
    %34 = vector.broadcast %cst_13 : f32 to vector<8x1xf32>
    %35 = arith.addf %33, %34 : vector<8x1xf32>
    %cst_14 = arith.constant 0.000000e+00 : f32
    %36 = vector.broadcast %cst_14 : f32 to vector<8x1xf32>
    %37 = arith.maximumf %35, %36 : vector<8x1xf32>
    %38 = arith.subf %32, %24 : vector<8x1xf32>
    %cst_15 = arith.constant 3.000000e-01 : f32
    %39 = vector.broadcast %cst_15 : f32 to vector<8x1xf32>
    %40 = arith.addf %38, %39 : vector<8x1xf32>
    %cst_16 = arith.constant 0.000000e+00 : f32
    %41 = vector.broadcast %cst_16 : f32 to vector<8x1xf32>
    %42 = arith.maximumf %40, %41 : vector<8x1xf32>
    %c-1_i32_17 = arith.constant -1 : i32
    %43 = vector.broadcast %c-1_i32_17 : i32 to vector<8x1xi32>
    %44 = arith.cmpi ne, %6, %43 : vector<8x1xi32>
    %45 = arith.addf %37, %42 : vector<8x1xf32>
    %cst_18 = arith.constant 0.000000e+00 : f32
    %46 = vector.broadcast %cst_18 : f32 to vector<8x1xf32>
    %47 = arith.select %44, %45, %46 : vector<8x1xi1>, vector<8x1xf32>
    %c0_19 = arith.constant 0 : index
    %c0_20 = arith.constant 0 : index
    %48 = vector.load %arg5[%c0_19, %c0_20] : memref<8x1xf32, #tpu.memory_space<vmem>>, vector<8x1xf32>
    tpu.vector_store %arg5[%c0_19, %c0_20], %47 {strides = array<i32>} : memref<8x1xf32, #tpu.memory_space<vmem>>, vector<8x1xf32>,
    return
  }
  func.func @transform_0(%arg0: i32) -> (i32, i32) {
    %c0_i32 = arith.constant 0 : i32
    %c0_i32_0 = arith.constant 0 : i32
    return %arg0, %c0_i32 : i32, i32
  }
  func.func @transform_1(%arg0: i32) -> (i32, i32) {
    %c0_i32 = arith.constant 0 : i32
    %c0_i32_0 = arith.constant 0 : i32
    %c0_i32_1 = arith.constant 0 : i32
    return %c0_i32, %c0_i32_0 : i32, i32
  }
  func.func @transform_2(%arg0: i32) -> (i32, i32) {
    %c0_i32 = arith.constant 0 : i32
    %c0_i32_0 = arith.constant 0 : i32
    return %arg0, %c0_i32 : i32, i32
  }
  func.func @transform_3(%arg0: i32) -> (i32, i32) {
    %c0_i32 = arith.constant 0 : i32
    %c0_i32_0 = arith.constant 0 : i32
    %c0_i32_1 = arith.constant 0 : i32
    return %c0_i32, %c0_i32_0 : i32, i32
  }
  func.func @transform_4(%arg0: i32) -> (i32, i32) {
    %c0_i32 = arith.constant 0 : i32
    %c0_i32_0 = arith.constant 0 : i32
    return %arg0, %c0_i32 : i32, i32
  }
}

</mosaic_0001>

<llo_original>
// kernel: tpu_custom_call.1
$region0: #{tpu_custom_call.1}
  #allocation0 [shape = 'u32[]', space=smem, size = 0x4, offset = 0x4, fixed_abs, tag = 'smem constant byte address 0x4 - core index']
  #allocation1 [shape = 'u32[144,128]{1,0:T(1,128)}', space=vmem, size = 0x12000, scoped, tag = 'internal scratch']
  %s0 = inlined_call_operand.vmem [shape: f32[8,128], index: 0, kind: input, shape index: {}]
  %s1 = inlined_call_operand.vmem [shape: f32[128,8], index: 1, kind: input, shape index: {}]
  %s2 = inlined_call_operand.vmem [shape: s32[8,2], index: 2, kind: input, shape index: {}]
  %s3 = inlined_call_operand.vmem [shape: s32[2,8], index: 3, kind: input, shape index: {}]
  %s4 = inlined_call_operand.vmem [shape: f32[8,1], index: 4, kind: output, shape index: {}]
  %s5 = sld [smem:[#allocation0]]
  $region26: #{tpu_custom_call.1} parent=0
    _
  %s7 = ssub.s32 1, %s5
  %s8 = scalar_select 0, %s7, %s5
  // Predicated region
  $region2: #{tpu_custom_call.1} parent=0 // pred_check
    _
  $region3: #{tpu_custom_call.1} parent=0 // pred_check_branch
    %10 = sbr.rel (0) target = $region5
  $region4: #{tpu_custom_call.1} parent=0 // pred_region
    _
  $region5: #{tpu_custom_call.1} parent=0 // pred_fallthru
    _
  // Predicated region
  $region6: #{tpu_custom_call.1} parent=0 // pred_check
    _
  $region7: #{tpu_custom_call.1} parent=0 // pred_check_branch
    %12 = sbr.rel (0) target = $region9
  $region8: #{tpu_custom_call.1} parent=0 // pred_region
    _
  $region9: #{tpu_custom_call.1} parent=0 // pred_fallthru
    _
  // Predicated region
  $region10: #{tpu_custom_call.1} parent=0 // pred_check
    _
  $region11: #{tpu_custom_call.1} parent=0 // pred_check_branch
    %14 = sbr.rel (0) target = $region13
  $region12: #{tpu_custom_call.1} parent=0 // pred_region
    _
  $region13: #{tpu_custom_call.1} parent=0 // pred_fallthru
    _
  // Predicated region
  $region14: #{tpu_custom_call.1} parent=0 // pred_check
    _
  $region15: #{tpu_custom_call.1} parent=0 // pred_check_branch
    %16 = sbr.rel (0) target = $region17
  $region16: #{tpu_custom_call.1} parent=0 // pred_region
    _
  $region17: #{tpu_custom_call.1} parent=0 // pred_fallthru
    _
  %v17 = vld [vmem:[%s0] sm:$0xff]
  %v18 = vld [vmem:[%s1] sm:$0xff]
  %v19 = vld [vmem:[%s1 + $0x8] sm:$0xff]
  %v20 = vld [vmem:[%s1 + $0x10] sm:$0xff]
  %v21 = vld [vmem:[%s1 + $0x18] sm:$0xff]
  %v22 = vld [vmem:[%s1 + $0x20] sm:$0xff]
  %v23 = vld [vmem:[%s1 + $0x28] sm:$0xff]
  %v24 = vld [vmem:[%s1 + $0x30] sm:$0xff]
  %v25 = vld [vmem:[%s1 + $0x38] sm:$0xff]
  %v26 = vld [vmem:[%s1 + $0x40] sm:$0xff]
  %v27 = vld [vmem:[%s1 + $0x48] sm:$0xff]
  %v28 = vld [vmem:[%s1 + $0x50] sm:$0xff]
  %v29 = vld [vmem:[%s1 + $0x58] sm:$0xff]
  %v30 = vld [vmem:[%s1 + $0x60] sm:$0xff]
  %v31 = vld [vmem:[%s1 + $0x68] sm:$0xff]
  %v32 = vld [vmem:[%s1 + $0x70] sm:$0xff]
  %v33 = vld [vmem:[%s1 + $0x78] sm:$0xff]
  %34 = vmatprep.subr.mxu0 0.0
  %35 = vmatpush1.msra.mxu0 %v33
  %36 = vmatprep.subr.mxu0 0.0
  %37 = vmatpush1.msra.mxu0 %v32
  %38 = vmatprep.subr.mxu0 0.0
  %39 = vmatpush1.msra.mxu0 %v31
  %40 = vmatprep.subr.mxu0 0.0
  %41 = vmatpush1.msra.mxu0 %v30
  %42 = vmatprep.subr.mxu0 0.0
  %43 = vmatpush1.msra.mxu0 %v29
  %44 = vmatprep.subr.mxu0 0.0
  %45 = vmatpush1.msra.mxu0 %v28
  %46 = vmatprep.subr.mxu0 0.0
  %47 = vmatpush1.msra.mxu0 %v27
  %48 = vmatprep.subr.mxu0 0.0
  %49 = vmatpush1.msra.mxu0 %v26
  %50 = vmatprep.subr.mxu0 0.0
  %51 = vmatpush1.msra.mxu0 %v25
  %52 = vmatprep.subr.mxu0 0.0
  %53 = vmatpush1.msra.mxu0 %v24
  %54 = vmatprep.subr.mxu0 0.0
  %55 = vmatpush1.msra.mxu0 %v23
  %56 = vmatprep.subr.mxu0 0.0
  %57 = vmatpush1.msra.mxu0 %v22
  %58 = vmatprep.subr.mxu0 0.0
  %59 = vmatpush1.msra.mxu0 %v21
  %60 = vmatprep.subr.mxu0 0.0
  %61 = vmatpush1.msra.mxu0 %v20
  %62 = vmatprep.subr.mxu0 0.0
  %63 = vmatpush1.msra.mxu0 %v19
  %64 = vmatprep.subr.mxu0 0.0
  %65 = vmatpush1.msra.mxu0 %v18
  %66 = vmatprep.subr.mxu0 0.0
  %67 = vmatpush2.msra.mxu0 0.0
  %68 = vmatprep.subr.mxu0 0.0
  %69 = vmatpush2.msra.mxu0 0.0
  %70 = vmatprep.subr.mxu0 0.0
  %71 = vmatpush2.msra.mxu0 0.0
  %72 = vmatprep.subr.mxu0 0.0
  %73 = vmatpush2.msra.mxu0 0.0
  %74 = vmatprep.subr.mxu0 0.0
  %75 = vmatpush2.msra.mxu0 0.0
  %76 = vmatprep.subr.mxu0 0.0
  %77 = vmatpush2.msra.mxu0 0.0
  %78 = vmatprep.subr.mxu0 0.0
  %79 = vmatpush2.msra.mxu0 0.0
  %80 = vmatprep.subr.mxu0 0.0
  %81 = vmatpush2.msra.mxu0 0.0
  %82 = vmatprep.subr.mxu0 0.0
  %83 = vmatpush2.msra.mxu0 0.0
  %84 = vmatprep.subr.mxu0 0.0
  %85 = vmatpush2.msra.mxu0 0.0
  %86 = vmatprep.subr.mxu0 0.0
  %87 = vmatpush2.msra.mxu0 0.0
  %88 = vmatprep.subr.mxu0 0.0
  %89 = vmatpush2.msra.mxu0 0.0
  %90 = vmatprep.subr.mxu0 0.0
  %91 = vmatpush2.msra.mxu0 0.0
  %92 = vmatprep.subr.mxu0 0.0
  %93 = vmatpush2.msra.mxu0 0.0
  %94 = vmatprep.subr.mxu0 0.0
  %95 = vmatpush2.msra.mxu0 0.0
  %96 = vmatprep.subr.mxu0 0.0
  %97 = vmatpush2.msra.mxu0 0.0
  %98 = vmatprep.mubr.f32.mxu0 0.0
  %99 = vmatmul.mubr.f32.gmra.mxu0 %v17
  %v100 = vpop.f32.mrf.mxu0
  %v101 = vadd.f32 0.0, %v100
  %v102 = vpop.f32.mrf.mxu0
  %103 = vdwg.mxu0
  %v104 = vld [vmem:[%s2] sm:$0xff]
  %v105 = vld [vmem:[%s3] sm:$0x3]
  %106 = vset.pattern.permute.xlu0 0
  %107 = vperm.xlu0 %106, %v104
  %v108 = vpop.permute.xlu0 %107
  %v109 = vlaneseq
  %v110 = vshrl.u32 %v109, 7
  %v111 = vsub.s32 0, %v110
  %v112 = vrot.slane %v105, %v111
  %vm113 = vcmp.eq.s32.totalorder %v108, %v112
  %114 = vset.pattern.permute.xlu0 1
  %115 = vperm.xlu0 %114, %v104
  %v116 = vpop.permute.xlu0 %115
  %v117 = vlaneseq
  %v118 = vshrl.u32 %v117, 7
  %v119 = vsub.s32 1, %v118
  %v120 = vrot.slane %v105, %v119
  %vm121 = vcmp.eq.s32.totalorder %v116, %v120
  %vm122 = vmxor %vm113, %vm121
  %vm123 = vcmp.ne.s32.totalorder %v105, 4294967295
  %v124 = vsel %vm123, 1, 0
  %v125 = vlaneseq
  %v126 = vshrl.u32 %v125, 7
  %v127 = vsub.s32 1, %v126
  %v128 = vrot.slane %v124, %v127
  %vm129 = vcmp.eq.s32.totalorder %v128, 1
  %vm130 = vmand %vm122, %vm129
  %vm131 = vmxor %vm122, %vm130
  %v132 = vsel %vm121, %v101, 1e+08
  %vm133 = vcmask 64512
  %v134 = vsel %vm133, %v132, inf
  %135 = vmin.xlane.f32.xlu0 %v134
  %v136 = vpop.xlane.xlu0 %135
  %v137 = vsel %vm130, %v101, -1e+08
  %v138 = vsel %vm133, %v137, -inf
  %139 = vmax.xlane.f32.xlu0 %v138
  %v140 = vpop.xlane.xlu0 %139
  %v141 = vsel %vm131, %v101, -1e+08
  %v142 = vsel %vm133, %v141, -inf
  %143 = vmax.xlane.f32.xlu0 %v142
  %v144 = vpop.xlane.xlu0 %143
  %v145 = vsub.f32 %v140, %v136
  %v146 = vadd.f32 %v145, 0.3
  %v147 = vmax.f32 %v146, 0.0
  %v148 = vsub.f32 %v144, %v136
  %v149 = vadd.f32 %v148, 0.3
  %v150 = vmax.f32 %v149, 0.0
  %vm151 = vcmp.ne.s32.totalorder %v104, 4294967295
  %v152 = vadd.f32 %v147, %v150
  %v153 = vsel %vm151, %v152, 0.0
  %155 = vrot.lane.b32.xlu0 %v153, 127
  %v156 = vpop.permute.xlu0 %155
  %vm158 = vcmask 7168
  %159 = vst.msk [vmem:[%s4] sm:$0xff] %vm158, %v156
  // Predicated region
  $region18: #{tpu_custom_call.1} parent=0 // pred_check
    _
  $region19: #{tpu_custom_call.1} parent=0 // pred_check_branch
    %161 = sbr.rel (0) target = $region21
  $region20: #{tpu_custom_call.1} parent=0 // pred_region
    _
  $region21: #{tpu_custom_call.1} parent=0 // pred_fallthru
    _
  // Predicated region
  $region22: #{tpu_custom_call.1} parent=0 // pred_check
    _
  $region23: #{tpu_custom_call.1} parent=0 // pred_check_branch
    %163 = sbr.rel (0) target = $region25
  $region24: #{tpu_custom_call.1} parent=0 // pred_region
    _
  $region25: #{tpu_custom_call.1} parent=0 // pred_fallthru
    _

// kernel: tpu_custom_call.1
$region0: #{tpu_custom_call.1}
  #allocation0 [shape = 'u32[]', space=smem, size = 0x4, offset = 0x4, fixed_abs, tag = 'smem constant byte address 0x4 - core index']
  #allocation1 [shape = 'u32[144,128]{1,0:T(1,128)}', space=vmem, size = 0x12000, scoped, tag = 'internal scratch']
  %s0 = inlined_call_operand.vmem [shape: f32[8,128], index: 0, kind: input, shape index: {}]
  %s1 = inlined_call_operand.vmem [shape: f32[128,8], index: 1, kind: input, shape index: {}]
  %s2 = inlined_call_operand.vmem [shape: s32[8,2], index: 2, kind: input, shape index: {}]
  %s3 = inlined_call_operand.vmem [shape: s32[2,8], index: 3, kind: input, shape index: {}]
  %s4 = inlined_call_operand.vmem [shape: f32[8,1], index: 4, kind: output, shape index: {}]
  %s5 = sld [smem:[#allocation0]]
  $region26: #{tpu_custom_call.1} parent=0
    _
  %s7 = ssub.s32 1, %s5
  %s8 = scalar_select 0, %s7, %s5
  // Predicated region
  $region2: #{tpu_custom_call.1} parent=0 // pred_check
    _
  $region3: #{tpu_custom_call.1} parent=0 // pred_check_branch
    %10 = sbr.rel (0) target = $region5
  $region4: #{tpu_custom_call.1} parent=0 // pred_region
    _
  $region5: #{tpu_custom_call.1} parent=0 // pred_fallthru
    _
  // Predicated region
  $region6: #{tpu_custom_call.1} parent=0 // pred_check
    _
  $region7: #{tpu_custom_call.1} parent=0 // pred_check_branch
    %12 = sbr.rel (0) target = $region9
  $region8: #{tpu_custom_call.1} parent=0 // pred_region
    _
  $region9: #{tpu_custom_call.1} parent=0 // pred_fallthru
    _
  // Predicated region
  $region10: #{tpu_custom_call.1} parent=0 // pred_check
    _
  $region11: #{tpu_custom_call.1} parent=0 // pred_check_branch
    %14 = sbr.rel (0) target = $region13
  $region12: #{tpu_custom_call.1} parent=0 // pred_region
    _
  $region13: #{tpu_custom_call.1} parent=0 // pred_fallthru
    _
  // Predicated region
  $region14: #{tpu_custom_call.1} parent=0 // pred_check
    _
  $region15: #{tpu_custom_call.1} parent=0 // pred_check_branch
    %16 = sbr.rel (0) target = $region17
  $region16: #{tpu_custom_call.1} parent=0 // pred_region
    _
  $region17: #{tpu_custom_call.1} parent=0 // pred_fallthru
    _
  %v17 = vld [vmem:[%s0] sm:$0xff]
  %v18 = vld [vmem:[%s1] sm:$0xff]
  %v19 = vld [vmem:[%s1 + $0x8] sm:$0xff]
  %v20 = vld [vmem:[%s1 + $0x10] sm:$0xff]
  %v21 = vld [vmem:[%s1 + $0x18] sm:$0xff]
  %v22 = vld [vmem:[%s1 + $0x20] sm:$0xff]
  %v23 = vld [vmem:[%s1 + $0x28] sm:$0xff]
  %v24 = vld [vmem:[%s1 + $0x30] sm:$0xff]
  %v25 = vld [vmem:[%s1 + $0x38] sm:$0xff]
  %v26 = vld [vmem:[%s1 + $0x40] sm:$0xff]
  %v27 = vld [vmem:[%s1 + $0x48] sm:$0xff]
  %v28 = vld [vmem:[%s1 + $0x50] sm:$0xff]
  %v29 = vld [vmem:[%s1 + $0x58] sm:$0xff]
  %v30 = vld [vmem:[%s1 + $0x60] sm:$0xff]
  %v31 = vld [vmem:[%s1 + $0x68] sm:$0xff]
  %v32 = vld [vmem:[%s1 + $0x70] sm:$0xff]
  %v33 = vld [vmem:[%s1 + $0x78] sm:$0xff]
  %34 = vmatprep.subr.mxu0 0.0
  %35 = vmatpush1.msra.mxu0 %v33
  %36 = vmatprep.subr.mxu0 0.0
  %37 = vmatpush1.msra.mxu0 %v32
  %38 = vmatprep.subr.mxu0 0.0
  %39 = vmatpush1.msra.mxu0 %v31
  %40 = vmatprep.subr.mxu0 0.0
  %41 = vmatpush1.msra.mxu0 %v30
  %42 = vmatprep.subr.mxu0 0.0
  %43 = vmatpush1.msra.mxu0 %v29
  %44 = vmatprep.subr.mxu0 0.0
  %45 = vmatpush1.msra.mxu0 %v28
  %46 = vmatprep.subr.mxu0 0.0
  %47 = vmatpush1.msra.mxu0 %v27
  %48 = vmatprep.subr.mxu0 0.0
  %49 = vmatpush1.msra.mxu0 %v26
  %50 = vmatprep.subr.mxu0 0.0
  %51 = vmatpush1.msra.mxu0 %v25
  %52 = vmatprep.subr.mxu0 0.0
  %53 = vmatpush1.msra.mxu0 %v24
  %54 = vmatprep.subr.mxu0 0.0
  %55 = vmatpush1.msra.mxu0 %v23
  %56 = vmatprep.subr.mxu0 0.0
  %57 = vmatpush1.msra.mxu0 %v22
  %58 = vmatprep.subr.mxu0 0.0
  %59 = vmatpush1.msra.mxu0 %v21
  %60 = vmatprep.subr.mxu0 0.0
  %61 = vmatpush1.msra.mxu0 %v20
  %62 = vmatprep.subr.mxu0 0.0
  %63 = vmatpush1.msra.mxu0 %v19
  %64 = vmatprep.subr.mxu0 0.0
  %65 = vmatpush1.msra.mxu0 %v18
  %66 = vmatprep.subr.mxu0 0.0
  %67 = vmatpush2.msra.mxu0 0.0
  %68 = vmatprep.subr.mxu0 0.0
  %69 = vmatpush2.msra.mxu0 0.0
  %70 = vmatprep.subr.mxu0 0.0
  %71 = vmatpush2.msra.mxu0 0.0
  %72 = vmatprep.subr.mxu0 0.0
  %73 = vmatpush2.msra.mxu0 0.0
  %74 = vmatprep.subr.mxu0 0.0
  %75 = vmatpush2.msra.mxu0 0.0
  %76 = vmatprep.subr.mxu0 0.0
  %77 = vmatpush2.msra.mxu0 0.0
  %78 = vmatprep.subr.mxu0 0.0
  %79 = vmatpush2.msra.mxu0 0.0
  %80 = vmatprep.subr.mxu0 0.0
  %81 = vmatpush2.msra.mxu0 0.0
  %82 = vmatprep.subr.mxu0 0.0
  %83 = vmatpush2.msra.mxu0 0.0
  %84 = vmatprep.subr.mxu0 0.0
  %85 = vmatpush2.msra.mxu0 0.0
  %86 = vmatprep.subr.mxu0 0.0
  %87 = vmatpush2.msra.mxu0 0.0
  %88 = vmatprep.subr.mxu0 0.0
  %89 = vmatpush2.msra.mxu0 0.0
  %90 = vmatprep.subr.mxu0 0.0
  %91 = vmatpush2.msra.mxu0 0.0
  %92 = vmatprep.subr.mxu0 0.0
  %93 = vmatpush2.msra.mxu0 0.0
  %94 = vmatprep.subr.mxu0 0.0
  %95 = vmatpush2.msra.mxu0 0.0
  %96 = vmatprep.subr.mxu0 0.0
  %97 = vmatpush2.msra.mxu0 0.0
  %98 = vmatprep.mubr.f32.mxu0 0.0
  %99 = vmatmul.mubr.f32.gmra.mxu0 %v17
  %v100 = vpop.f32.mrf.mxu0
  %v101 = vadd.f32 0.0, %v100
  %v102 = vpop.f32.mrf.mxu0
  %103 = vdwg.mxu0
  %v104 = vld [vmem:[%s2] sm:$0xff]
  %v105 = vld [vmem:[%s3] sm:$0x3]
  %106 = vset.pattern.permute.xlu0 0
  %107 = vperm.xlu0 %106, %v104
  %v108 = vpop.permute.xlu0 %107
  %v109 = vlaneseq
  %v110 = vshrl.u32 %v109, 7
  %v111 = vsub.s32 0, %v110
  %v112 = vrot.slane %v105, %v111
  %vm113 = vcmp.eq.s32.totalorder %v108, %v112
  %114 = vset.pattern.permute.xlu0 1
  %115 = vperm.xlu0 %114, %v104
  %v116 = vpop.permute.xlu0 %115
  %v117 = vlaneseq
  %v118 = vshrl.u32 %v117, 7
  %v119 = vsub.s32 1, %v118
  %v120 = vrot.slane %v105, %v119
  %vm121 = vcmp.eq.s32.totalorder %v116, %v120
  %vm122 = vmxor %vm113, %vm121
  %vm123 = vcmp.ne.s32.totalorder %v105, 4294967295
  %v124 = vsel %vm123, 1, 0
  %v125 = vlaneseq
  %v126 = vshrl.u32 %v125, 7
  %v127 = vsub.s32 1, %v126
  %v128 = vrot.slane %v124, %v127
  %vm129 = vcmp.eq.s32.totalorder %v128, 1
  %vm130 = vmand %vm122, %vm129
  %vm131 = vmxor %vm122, %vm130
  %v132 = vsel %vm121, %v101, 1e+08
  %vm133 = vcmask 64512
  %v134 = vsel %vm133, %v132, inf
  %135 = vmin.xlane.f32.xlu0 %v134
  %v136 = vpop.xlane.xlu0 %135
  %v137 = vsel %vm130, %v101, -1e+08
  %v138 = vsel %vm133, %v137, -inf
  %139 = vmax.xlane.f32.xlu0 %v138
  %v140 = vpop.xlane.xlu0 %139
  %v141 = vsel %vm131, %v101, -1e+08
  %v142 = vsel %vm133, %v141, -inf
  %143 = vmax.xlane.f32.xlu0 %v142
  %v144 = vpop.xlane.xlu0 %143
  %v145 = vsub.f32 %v140, %v136
  %v146 = vadd.f32 %v145, 0.3
  %v147 = vmax.f32 %v146, 0.0
  %v148 = vsub.f32 %v144, %v136
  %v149 = vadd.f32 %v148, 0.3
  %v150 = vmax.f32 %v149, 0.0
  %vm151 = vcmp.ne.s32.totalorder %v104, 4294967295
  %v152 = vadd.f32 %v147, %v150
  %v153 = vsel %vm151, %v152, 0.0
  %155 = vrot.lane.b32.xlu0 %v153, 127
  %v156 = vpop.permute.xlu0 %155
  %vm158 = vcmask 7168
  %159 = vst.msk [vmem:[%s4] sm:$0xff] %vm158, %v156
  // Predicated region
  $region18: #{tpu_custom_call.1} parent=0 // pred_check
    _
  $region19: #{tpu_custom_call.1} parent=0 // pred_check_branch
    %161 = sbr.rel (0) target = $region21
  $region20: #{tpu_custom_call.1} parent=0 // pred_region
    _
  $region21: #{tpu_custom_call.1} parent=0 // pred_fallthru
    _
  // Predicated region
  $region22: #{tpu_custom_call.1} parent=0 // pred_check
    _
  $region23: #{tpu_custom_call.1} parent=0 // pred_check_branch
    %163 = sbr.rel (0) target = $region25
  $region24: #{tpu_custom_call.1} parent=0 // pred_region
    _
  $region25: #{tpu_custom_call.1} parent=0 // pred_fallthru
    _

</llo_original>
